<compile_context>
chip_gen: v7x
topology: tpu7x:2x2x1
jax: 0.10.0
libtpu: 0.0.40
codegen_flags: <defaults>
</compile_context>

<pallas_src>
import functools

import jax
import jax.numpy as jnp
from jax import lax
from jax.experimental import pallas as pl
from jax.experimental.pallas import tpu as pltpu

_LANE = 128
_ACC_SUBLANE = 8          # rows of the f32 accumulator tile
_CHUNK_ROWS = 256         # inner-loop sub-tile rows (256*128*4 B = 128 KiB / operand)


def _rowsum(a):
    """(m, 128) f32 with m % 8 == 0  ->  (8, 128) partial sums (VPU only)."""
    return a.reshape(-1, _ACC_SUBLANE, _LANE).sum(axis=0)


def _err_block_sum(x_ref, y_ref, nrows):
    """Sum of |x - y| over the first `nrows` rows of the block, as (8, 128)."""
    chunk = min(_CHUNK_ROWS, nrows)
    num_full = nrows // chunk
    rem = nrows - num_full * chunk

    def chunk_sum(r, m):
        x = x_ref[pl.ds(r, m), :].astype(jnp.float32)
        y = y_ref[pl.ds(r, m), :].astype(jnp.float32)
        return _rowsum(jnp.abs(x - y))

    acc = jnp.zeros((_ACC_SUBLANE, _LANE), jnp.float32)
    if num_full:
        def body(j, a):
            r = pl.multiple_of(j * chunk, chunk)
            return a + chunk_sum(r, chunk)
        acc = lax.fori_loop(0, num_full, body, acc,
                            unroll=True if num_full <= 4 else 4)
    if rem:
        acc = acc + chunk_sum(num_full * chunk, rem)
    return acc


def _werr_block_sums(x_ref, y_ref, w_ref, nrows):
    """(sum |x-y|*w, sum w) over the first `nrows` rows, each as (8, 128)."""
    chunk = min(_CHUNK_ROWS, nrows)
    num_full = nrows // chunk
    rem = nrows - num_full * chunk

    def chunk_sums(r, m):
        x = x_ref[pl.ds(r, m), :].astype(jnp.float32)
        y = y_ref[pl.ds(r, m), :].astype(jnp.float32)
        w = w_ref[pl.ds(r, m), :].astype(jnp.float32)   # weight.float() in PyTorch
        return _rowsum(jnp.abs(x - y) * w), _rowsum(w)

    acc_e = jnp.zeros((_ACC_SUBLANE, _LANE), jnp.float32)
    acc_w = jnp.zeros((_ACC_SUBLANE, _LANE), jnp.float32)
    if num_full:
        def body(j, carry):
            ae, aw = carry
            r = pl.multiple_of(j * chunk, chunk)
            de, dw = chunk_sums(r, chunk)
            return ae + de, aw + dw
        acc_e, acc_w = lax.fori_loop(0, num_full, body, (acc_e, acc_w),
                                     unroll=True if num_full <= 4 else 4)
    if rem:
        de, dw = chunk_sums(num_full * chunk, rem)
        acc_e, acc_w = acc_e + de, acc_w + dw
    return acc_e, acc_w


def _l1_sum_kernel(x_ref, y_ref, o_ref, *, steps_per_core, block_rows,
                   full_blocks, rem_rows):
    c = pl.program_id(0)                 # core split ("parallel")
    i = pl.program_id(1)                 # reduction steps ("arbitrary")
    gb = c * steps_per_core + i          # logical (unclamped) block index

    @pl.when(i == 0)
    def _():
        o_ref[...] = jnp.zeros_like(o_ref)

    # Hot path: full in-bounds blocks -> sub/abs/accumulate only, no masking.
    @pl.when(gb < full_blocks)
    def _():
        o_ref[...] += _err_block_sum(x_ref, y_ref, block_rows)[None]

    # Cold path (at most one grid step per call): ragged last block, handled
    # by statically slicing the valid rows.  Clamped duplicate blocks
    # (gb >= total_blocks) fall through both branches and contribute nothing.
    if rem_rows != block_rows:
        @pl.when(gb == full_blocks)
        def _():
            o_ref[...] += _err_block_sum(x_ref, y_ref, rem_rows)[None]


def _l1_weighted_kernel(x_ref, y_ref, w_ref, oe_ref, ow_ref, *, steps_per_core,
                        block_rows, full_blocks, rem_rows):
    c = pl.program_id(0)
    i = pl.program_id(1)
    gb = c * steps_per_core + i

    @pl.when(i == 0)
    def _():
        oe_ref[...] = jnp.zeros_like(oe_ref)
        ow_ref[...] = jnp.zeros_like(ow_ref)

    @pl.when(gb < full_blocks)
    def _():
        de, dw = _werr_block_sums(x_ref, y_ref, w_ref, block_rows)
        oe_ref[...] += de[None]
        ow_ref[...] += dw[None]

    if rem_rows != block_rows:
        @pl.when(gb == full_blocks)
        def _():
            de, dw = _werr_block_sums(x_ref, y_ref, w_ref, rem_rows)
            oe_ref[...] += de[None]
            ow_ref[...] += dw[None]


def _chip_params():
    """(tensorcores to split over, max block rows) for the current TPU."""
    kind = ""
    try:
        kind = jax.devices()[0].device_kind.lower()
    except Exception:
        pass
    num_tc = 2 if "v7" in kind else 1    # 2 TensorCores per chip on v7x only
    # ~2 MiB f32 blocks hit the HBM roofline sweet spot; cap at ~1 MiB on v5e so
    # the 3-input weighted path stays well inside its 16 MiB scoped-VMEM default.
    is_v5e = ("v5 lite" in kind) or ("v5e" in kind) or ("v5lite" in kind)
    max_rows = 2048 if is_v5e else 4096
    return num_tc, max_rows


def l1_loss(output, target, weight=None, mean=False):
    """Pallas-backed L1Loss.forward."""
    assert output.shape == target.shape
    if weight is not None:
        assert weight.shape == output.shape
    n = int(output.size)
    if n == 0:
        return jnp.zeros((), jnp.float32)

    arrays = [output, target] + ([] if weight is None else [weight])
    # dtype-aware tiling granularity (f32 -> 8 sublanes, bf16 -> 16, int8 -> 32)
    packing = max(max(1, 4 // jnp.dtype(a.dtype).itemsize) for a in arrays)
    sub = _ACC_SUBLANE * packing
    tile = sub * _LANE

    aligned = (n // tile) * tile
    rows = aligned // _LANE              # multiple of `sub`
    flats = [a.reshape(-1) for a in arrays]

    # --- ragged tail (< tile elements): wrapper-side, no pad copy of inputs ---
    tail_err = jnp.zeros((), jnp.float32)
    tail_w = jnp.zeros((), jnp.float32)
    if aligned != n:
        xt = flats[0][aligned:].astype(jnp.float32)
        yt = flats[1][aligned:].astype(jnp.float32)
        et = jnp.abs(xt - yt)
        if weight is None:
            tail_err = et.sum()
        else:
            wt = flats[2][aligned:].astype(jnp.float32)
            tail_err = (et * wt).sum()
            tail_w = wt.sum()

    # --- aligned prefix: streaming Pallas reduction ---
    kern_err = jnp.zeros((), jnp.float32)
    kern_w = jnp.zeros((), jnp.float32)
    if rows > 0:
        num_tc, max_rows = _chip_params()
        block_rows = min(max_rows, rows)
        total_blocks = -(-rows // block_rows)
        rem_rows = rows - (total_blocks - 1) * block_rows
        full_blocks = total_blocks if rem_rows == block_rows else total_blocks - 1
        nsplit = num_tc if total_blocks >= num_tc else 1
        steps_per_core = -(-total_blocks // nsplit)
        grid = (nsplit, steps_per_core)
        last = total_blocks - 1

        def _as_rows(flat):
            if aligned != n:
                flat = flat[:aligned]
            return flat.reshape(rows, _LANE)

        def idx_map(c, i):
            # Clamp so the DMA never starts past the last real block; the
            # clamped duplicate step is skipped inside the kernel.
            return (jnp.minimum(c * steps_per_core + i, last), 0)

        in_spec = pl.BlockSpec((block_rows, _LANE), idx_map)
        out_spec = pl.BlockSpec((1, _ACC_SUBLANE, _LANE), lambda c, i: (c, 0, 0))
        acc_shape = jax.ShapeDtypeStruct((nsplit, _ACC_SUBLANE, _LANE),
                                         jnp.float32)

        itemsize = max(jnp.dtype(a.dtype).itemsize for a in arrays)
        vmem_need = len(arrays) * 2 * block_rows * _LANE * itemsize + (8 << 20)
        cparams = pltpu.CompilerParams(
            dimension_semantics=("parallel", "arbitrary"),
            vmem_limit_bytes=int(min(48 << 20, max(32 << 20, vmem_need))))

        common = dict(steps_per_core=steps_per_core, block_rows=block_rows,
                      full_blocks=full_blocks, rem_rows=rem_rows)

        if weight is None:
            kern = functools.partial(_l1_sum_kernel, **common)
            err_part = pl.pallas_call(
                kern,
                out_shape=acc_shape,
                grid_spec=pltpu.PrefetchScalarGridSpec(
                    num_scalar_prefetch=0,
                    grid=grid,
                    in_specs=[in_spec, in_spec],
                    out_specs=out_spec),
                compiler_params=cparams,
            )(_as_rows(flats[0]), _as_rows(flats[1]))
            kern_err = err_part.sum()
        else:
            kern = functools.partial(_l1_weighted_kernel, **common)
            err_part, w_part = pl.pallas_call(
                kern,
                out_shape=(acc_shape, acc_shape),
                grid_spec=pltpu.PrefetchScalarGridSpec(
                    num_scalar_prefetch=0,
                    grid=grid,
                    in_specs=[in_spec, in_spec, in_spec],
                    out_specs=[out_spec, out_spec]),
                compiler_params=cparams,
            )(_as_rows(flats[0]), _as_rows(flats[1]), _as_rows(flats[2]))
            kern_err = err_part.sum()
            kern_w = w_part.sum()

    total_err = kern_err + tail_err
    if weight is not None:
        if mean:
            return total_err / (kern_w + tail_w)
        return total_err
    if mean:
        return total_err / jnp.float32(n)
    return total_err


if __name__ == "__main__":
    key = jax.random.PRNGKey(0)
    k1, k2, k3 = jax.random.split(key, 3)

    # Small NCHW inputs consistent with the module's typical use.
    shape = (2, 4, 16, 16)            # 2048 elements (single aligned block)
    output = jax.random.normal(k1, shape, dtype=jnp.float32)
    target = jax.random.normal(k2, shape, dtype=jnp.float32)
    weight = jax.random.uniform(k3, shape, dtype=jnp.float32)

    loss_sum = jax.block_until_ready(l1_loss(output, target))
    loss_mean = jax.block_until_ready(l1_loss(output, target, mean=True))
    loss_wsum = jax.block_until_ready(l1_loss(output, target, weight=weight))
    loss_wmean = jax.block_until_ready(
        l1_loss(output, target, weight=weight, mean=True))

    err = jnp.abs(output - target)
    assert jnp.allclose(loss_sum, err.sum(), rtol=1e-5, atol=1e-4)
    assert jnp.allclose(loss_mean, err.mean(), rtol=1e-5, atol=1e-6)
    assert jnp.allclose(loss_wsum, (err * weight).sum(), rtol=1e-5, atol=1e-4)
    assert jnp.allclose(loss_wmean, (err * weight).sum() / weight.sum(),
                        rtol=1e-5, atol=1e-6)

    # Ragged tail (n % 1024 != 0) -> wrapper-side tail path (no pad copy).
    shape2 = (2, 3, 17, 19)           # 1938 elements
    o2 = jax.random.normal(k1, shape2, dtype=jnp.float32)
    t2 = jax.random.normal(k2, shape2, dtype=jnp.float32)
    l2 = jax.block_until_ready(l1_loss(o2, t2, mean=True))
    assert jnp.allclose(l2, jnp.abs(o2 - t2).mean(), rtol=1e-5, atol=1e-6)

    # Multi-block + ragged block remainder + (on v7x) 2-way core split.
    shape3 = (4, 8, 128, 129)         # 528384 elements -> 4128 rows
    o3 = jax.random.normal(k1, shape3, dtype=jnp.float32)
    t3 = jax.random.normal(k2, shape3, dtype=jnp.float32)
    w3 = jax.random.uniform(k3, shape3, dtype=jnp.float32)
    l3s = jax.block_until_ready(l1_loss(o3, t3))
    l3w = jax.block_until_ready(l1_loss(o3, t3, weight=w3, mean=True))
    assert jnp.allclose(l3s, jnp.abs(o3 - t3).sum(), rtol=1e-4, atol=1e-2)
    assert jnp.allclose(l3w, (jnp.abs(o3 - t3) * w3).sum() / w3.sum(),
                        rtol=1e-4, atol=1e-5)

    print("KERNEL_OK")
</pallas_src>

<mosaic_0001>
module attributes {stable_mosaic.version = 11 : i64} {
  func.func @_l1_sum_kernel(%arg0: i32, %arg1: i32, %arg2: memref<16x128xf32, #tpu.memory_space<vmem>>, %arg3: memref<16x128xf32, #tpu.memory_space<vmem>>, %arg4: memref<1x8x128xf32, #tpu.memory_space<vmem>>) attributes {dimension_semantics = [#tpu.dimension_semantics<parallel>, #tpu.dimension_semantics<arbitrary>], iteration_bounds = array<i64: 1, 1>, scalar_prefetch = 0 : i64, scratch_operands = 0 : i64, tpu.core_type = #tpu.core_type<tc>, window_params = [{transform_indices = @transform_0, window_bounds = array<i64: 16, 128>}, {transform_indices = @transform_1, window_bounds = array<i64: 16, 128>}, {transform_indices = @transform_2, window_bounds = array<i64: 1, 8, 128>}]} {
    %c1_i32 = arith.constant 1 : i32
    %0 = arith.muli %arg0, %c1_i32 : i32
    %1 = arith.addi %0, %arg1 : i32
    %c0_i32 = arith.constant 0 : i32
    %2 = arith.cmpi eq, %arg1, %c0_i32 : i32
    %3 = arith.extui %2 : i1 to i32
    %c0_i32_0 = arith.constant 0 : i32
    %4 = arith.cmpi ne, %3, %c0_i32_0 : i32
    scf.if %4 {
      %cst = arith.constant 0.000000e+00 : f32
      %8 = vector.broadcast %cst : f32 to vector<1x8x128xf32>
      %c0 = arith.constant 0 : index
      %c0_3 = arith.constant 0 : index
      %c0_4 = arith.constant 0 : index
      %9 = vector.load %arg4[%c0, %c0_3, %c0_4] : memref<1x8x128xf32, #tpu.memory_space<vmem>>, vector<1x8x128xf32>
      tpu.vector_store %arg4[%c0, %c0_3, %c0_4], %8 {strides = array<i32>} : memref<1x8x128xf32, #tpu.memory_space<vmem>>, vector<1x8x128xf32>,
    } else {
    }
    %c1_i32_1 = arith.constant 1 : i32
    %5 = arith.cmpi slt, %1, %c1_i32_1 : i32
    %6 = arith.extui %5 : i1 to i32
    %c0_i32_2 = arith.constant 0 : i32
    %7 = arith.cmpi ne, %6, %c0_i32_2 : i32
    scf.if %7 {
      %c0 = arith.constant 0 : index
      %c0_3 = arith.constant 0 : index
      %c0_4 = arith.constant 0 : index
      %8 = vector.load %arg4[%c0, %c0_3, %c0_4] : memref<1x8x128xf32, #tpu.memory_space<vmem>>, vector<1x8x128xf32>
      %cst = arith.constant 0.000000e+00 : f32
      %9 = vector.broadcast %cst : f32 to vector<8x128xf32>
      %c0_i32_5 = arith.constant 0 : i32
      %c16_i32 = arith.constant 16 : i32
      %10 = arith.muli %c0_i32_5, %c16_i32 : i32
      %11 = tpu.assume_multiple %10, 16 : i32
      %12 = arith.index_cast %11 : i32 to index
      %c0_6 = arith.constant 0 : index
      %13 = vector.load %arg2[%12, %c0_6] : memref<16x128xf32, #tpu.memory_space<vmem>>, vector<16x128xf32>
      %14 = arith.index_cast %11 : i32 to index
      %c0_7 = arith.constant 0 : index
      %15 = vector.load %arg3[%14, %c0_7] : memref<16x128xf32, #tpu.memory_space<vmem>>, vector<16x128xf32>
      %16 = arith.subf %13, %15 : vector<16x128xf32>
      %17 = math.absf %16 : vector<16x128xf32>
      %18 = vector.shape_cast %17 : vector<16x128xf32> to vector<2x8x128xf32>
      %cst_8 = arith.constant dense<0.000000e+00> : vector<8x128xf32>
      %19 = vector.multi_reduction <add>, %18, %cst_8 [0] : vector<2x8x128xf32> to vector<8x128xf32>
      %20 = arith.addf %9, %19 : vector<8x128xf32>
      %c1_i32_9 = arith.constant 1 : i32
      %21 = vector.shape_cast %20 : vector<8x128xf32> to vector<1x8x128xf32>
      %22 = arith.addf %8, %21 : vector<1x8x128xf32>
      %c0_10 = arith.constant 0 : index
      %c0_11 = arith.constant 0 : index
      %c0_12 = arith.constant 0 : index
      %23 = vector.load %arg4[%c0_10, %c0_11, %c0_12] : memref<1x8x128xf32, #tpu.memory_space<vmem>>, vector<1x8x128xf32>
      tpu.vector_store %arg4[%c0_10, %c0_11, %c0_12], %22 {strides = array<i32>} : memref<1x8x128xf32, #tpu.memory_space<vmem>>, vector<1x8x128xf32>,
    } else {
    }
    return
  }
  func.func @transform_0(%arg0: i32, %arg1: i32) -> (i32, i32) {
    %c1_i32 = arith.constant 1 : i32
    %0 = arith.muli %arg0, %c1_i32 : i32
    %1 = arith.addi %0, %arg1 : i32
    %c0_i32 = arith.constant 0 : i32
    %2 = arith.minsi %1, %c0_i32 : i32
    %c0_i32_0 = arith.constant 0 : i32
    %c0_i32_1 = arith.constant 0 : i32
    return %2, %c0_i32_0 : i32, i32
  }
  func.func @transform_1(%arg0: i32, %arg1: i32) -> (i32, i32) {
    %c1_i32 = arith.constant 1 : i32
    %0 = arith.muli %arg0, %c1_i32 : i32
    %1 = arith.addi %0, %arg1 : i32
    %c0_i32 = arith.constant 0 : i32
    %2 = arith.minsi %1, %c0_i32 : i32
    %c0_i32_0 = arith.constant 0 : i32
    %c0_i32_1 = arith.constant 0 : i32
    return %2, %c0_i32_0 : i32, i32
  }
  func.func @transform_2(%arg0: i32, %arg1: i32) -> (i32, i32, i32) {
    %c0_i32 = arith.constant 0 : i32
    %c0_i32_0 = arith.constant 0 : i32
    %c0_i32_1 = arith.constant 0 : i32
    return %arg0, %c0_i32, %c0_i32_0 : i32, i32, i32
  }
}

</mosaic_0001>

<llo_original>
// kernel: tpu_custom_call.1
$region0: #{tpu_custom_call.1}
  #allocation0 [shape = 'u32[]', space=smem, size = 0x4, offset = 0x4, fixed_abs, tag = 'smem constant byte address 0x4 - core index']
  #allocation1 [shape = 'u32[144,128]{1,0:T(1,128)}', space=vmem, size = 0x12000, scoped, tag = 'internal scratch']
  %s0 = inlined_call_operand.hbm [shape: f32[16,128], index: 0, kind: input, shape index: {}]
  %s1 = inlined_call_operand.hbm [shape: f32[16,128], index: 1, kind: input, shape index: {}]
  %s2 = inlined_call_operand.hbm [shape: f32[1,8,128], index: 2, kind: output, shape index: {}]
  %s3 = sld [smem:[#allocation0]]
  $region34: #{tpu_custom_call.1} parent=0
    _
  %s5 = ssub.s32 1, %s3
  %s6 = scalar_select 0, %s5, %s3
  $region1: #{tpu_custom_call.1} parent=0
    #allocation2 [shape = 'u8[8192]{0}', space=vmem, size = 0x2000, scoped, tag = 'input window, operand 0, single buffered']
    #allocation3 [shape = 's32[1]{0}', space=sflag, size = 0x4, scoped, tag = 'scoped memory for tpu_custom_call.1']
    #allocation4 [shape = 's32[1]{0}', space=sflag, size = 0x4, scoped, tag = 'scoped memory for tpu_custom_call.1']
    #allocation5 [shape = 'u8[8192]{0}', space=vmem, size = 0x2000, scoped, tag = 'input window, operand 1, single buffered']
    #allocation6 [shape = 's32[1]{0}', space=sflag, size = 0x4, scoped, tag = 'scoped memory for tpu_custom_call.1']
    #allocation7 [shape = 'u8[4096]{0}', space=vmem, size = 0x1000, scoped, tag = 'output window, operand 0, single buffered']
    %7 = vsyncpa [#allocation3], 0
    %8 = vsyncpa [#allocation6], 0
    %9 = vsyncpa [#allocation4], 0
    // Predicated region
    $region2: #{tpu_custom_call.1} parent=1 // pred_check
      _
    $region3: #{tpu_custom_call.1} parent=1 // pred_check_branch
      %11 = sbr.rel (0) target = $region5
    $region4: #{tpu_custom_call.1} parent=1 // pred_region
      %s12 = sadd.s32 0, 0
      %p13 = scmp.lt.s32.totalorder %s12, 0
      %s14 = scalar_select %p13, %s12, 0
      %s15 = smul.u32 2, %s14
      %s17 = ssub.s32 256, 256
      %18 = vsyncadd [#allocation3], %s17
      %s19 = smul.addr %s15, 128
      %s20 = scalar_lea.hbm %s0, %s19
      %s21 = sshll.u32 [#allocation2], 4
      %s22 = int_to_ptr.vmem [resolvable:$true] %s21
      %27 = dma.hbm_to_vmem [thread:$0]  %s20, 256, %s22, [#allocation3], 128, 128, 8
    $region5: #{tpu_custom_call.1} parent=1 // pred_fallthru
      _
    // Predicated region
    $region6: #{tpu_custom_call.1} parent=1 // pred_check
      _
    $region7: #{tpu_custom_call.1} parent=1 // pred_check_branch
      %29 = sbr.rel (0) target = $region9
    $region8: #{tpu_custom_call.1} parent=1 // pred_region
      %s30 = sadd.s32 0, 0
      %p31 = scmp.lt.s32.totalorder %s30, 0
      %s32 = scalar_select %p31, %s30, 0
      %s33 = smul.u32 2, %s32
      %s35 = ssub.s32 256, 256
      %36 = vsyncadd [#allocation6], %s35
      %s37 = smul.addr %s33, 128
      %s38 = scalar_lea.hbm %s1, %s37
      %s39 = sshll.u32 [#allocation5], 4
      %s40 = int_to_ptr.vmem [resolvable:$true] %s39
      %45 = dma.hbm_to_vmem [thread:$0]  %s38, 256, %s40, [#allocation6], 128, 128, 8
    $region9: #{tpu_custom_call.1} parent=1 // pred_fallthru
      _
    // Predicated region
    $region10: #{tpu_custom_call.1} parent=1 // pred_check
      _
    $region11: #{tpu_custom_call.1} parent=1 // pred_check_branch
      %47 = sbr.rel (0) target = $region13
    $region12: #{tpu_custom_call.1} parent=1 // pred_region
      %48 = dma.done [#allocation3], 256
    $region13: #{tpu_custom_call.1} parent=1 // pred_fallthru
      _
    // Predicated region
    $region14: #{tpu_custom_call.1} parent=1 // pred_check
      _
    $region15: #{tpu_custom_call.1} parent=1 // pred_check_branch
      %50 = sbr.rel (0) target = $region17
    $region16: #{tpu_custom_call.1} parent=1 // pred_region
      %51 = dma.done [#allocation6], 256
    $region17: #{tpu_custom_call.1} parent=1 // pred_fallthru
      _
    %s52 = sadd.s32 0, 0
    %p53 = scmp.lt.s32.totalorder %s52, 0
    %s54 = scalar_select %p53, %s52, 0
    %s55 = smul.u32 2, %s54
    %s56 = sadd.s32 0, 0
    %p57 = scmp.lt.s32.totalorder %s56, 0
    %s58 = scalar_select %p57, %s56, 0
    %s59 = smul.u32 2, %s58
    %s60 = sadd.s32 0, 0
    %p61 = scmp.eq.s32.totalorder 0, 0
    // Predicated region
    $region18: #{tpu_custom_call.1} parent=1 // pred_check
      %p62 = pneg %p61
    $region19: #{tpu_custom_call.1} parent=1 // pred_check_branch
      %64 = sbr.rel (%p62) target = $region21
    $region20: #{tpu_custom_call.1} parent=1 // pred_region
      %65 = vst [vmem:[#allocation7] sm:$0xff] 0.0
    $region21: #{tpu_custom_call.1} parent=1 // pred_fallthru
      _
    %p66 = scmp.lt.s32.totalorder %s60, 1
    // Predicated region
    $region22: #{tpu_custom_call.1} parent=1 // pred_check
      %p67 = pneg %p66
    $region23: #{tpu_custom_call.1} parent=1 // pred_check_branch
      %69 = sbr.rel (%p67) target = $region25
    $region24: #{tpu_custom_call.1} parent=1 // pred_region
      %v70 = vld [vmem:[#allocation7] sm:$0xff]
      %v71 = vld [vmem:[#allocation2] sm:$0xff]
      %v72 = vld [vmem:[#allocation2 + $0x8] sm:$0xff]
      %v73 = vld [vmem:[#allocation5] sm:$0xff]
      %v74 = vld [vmem:[#allocation5 + $0x8] sm:$0xff]
      %v75 = vsub.f32 %v71, %v73
      %v76 = vsub.f32 %v72, %v74
      %v77 = vand.u32 2147483647, %v75
      %v78 = vand.u32 2147483647, %v76
      %v79 = vadd.f32 %v77, %v78
      %v80 = vadd.f32 %v79, 0.0
      %v81 = vadd.f32 %v70, %v80
      %82 = vst [vmem:[#allocation7] sm:$0xff] %v81
    $region25: #{tpu_custom_call.1} parent=1 // pred_fallthru
      _
    // Predicated region
    $region26: #{tpu_custom_call.1} parent=1 // pred_check
      _
    $region27: #{tpu_custom_call.1} parent=1 // pred_check_branch
      %84 = sbr.rel (0) target = $region29
    $region28: #{tpu_custom_call.1} parent=1 // pred_region
      %s86 = ssub.s32 128, 128
      %87 = vsyncadd [#allocation4], %s86
      %s89 = sshll.u32 [#allocation7], 4
      %s90 = int_to_ptr.vmem [resolvable:$true] %s89
      %92 = dma.vmem_to_hbm [thread:$0]  %s90, 128, %s2, [#allocation4]
    $region29: #{tpu_custom_call.1} parent=1 // pred_fallthru
      _
    // Predicated region
    $region30: #{tpu_custom_call.1} parent=1 // pred_check
      _
    $region31: #{tpu_custom_call.1} parent=1 // pred_check_branch
      %94 = sbr.rel (0) target = $region33
    $region32: #{tpu_custom_call.1} parent=1 // pred_region
      %95 = dma.done [#allocation4], 128
    $region33: #{tpu_custom_call.1} parent=1 // pred_fallthru
      _
    %96 = vsyncpa [#allocation3], 1
    %97 = vsyncpa [#allocation6], 1
    %98 = vsyncpa [#allocation4], 1

</llo_original>
